<compile_context>
chip_gen: v6e
topology: v6e:2x2x1
jax: 0.10.0
libtpu: 0.0.40
codegen_flags: <defaults>
</compile_context>

<pallas_src>
import jax
import jax.numpy as jnp
from jax.experimental import pallas as pl
from jax.experimental.pallas import tpu as pltpu


# ---------------------------------------------------------------------------
# Rotary table (equivalent of _create_rotary_embed_table), pre-interleaved and
# pre-masked so the kernel never builds a parity mask or de-interleaves lanes.
# ---------------------------------------------------------------------------
def create_rotary_embed_table(max_seqlen: int, dim: int, theta_value: float = 10000.0):
    half = dim // 2
    freqs = 1.0 / theta_value ** (jnp.arange(0, dim, 2)[:half].astype(jnp.float32) / dim)
    t = jnp.arange(max_seqlen, dtype=jnp.float32)
    angles = jnp.outer(t, freqs)                                  # [max_seqlen, dim//2]
    cos = jnp.cos(angles)
    sin = jnp.sin(angles)
    zeros = jnp.zeros_like(sin)
    cos_rep = jnp.repeat(cos, 2, axis=-1)                         # [max_seqlen, dim]
    # sin_fwd multiplies x[..., j+1]: active only on even lanes, with a minus sign.
    sin_fwd = jnp.stack([-sin, zeros], axis=-1).reshape(max_seqlen, dim)
    # sin_bwd multiplies x[..., j-1]: active only on odd lanes, with a plus sign.
    sin_bwd = jnp.stack([zeros, sin], axis=-1).reshape(max_seqlen, dim)
    return cos_rep, sin_fwd, sin_bwd


# ---------------------------------------------------------------------------
# Pallas kernel.
#   out[..., 2i]   = x[..., 2i]  *cos_i - x[..., 2i+1]*sin_i
#   out[..., 2i+1] = x[..., 2i+1]*cos_i + x[..., 2i]  *sin_i
# computed as
#   out = x*cos_rep + roll(x, D-1)*sin_fwd + roll(x, 1)*sin_bwd
# where roll(x, D-1)[..., j] == x[..., (j+1) % D] and roll(x, 1)[..., j] == x[..., j-1].
# ---------------------------------------------------------------------------
def _rope_kernel(cos_ref, sin_fwd_ref, sin_bwd_ref, xq_ref, xk_ref, oq_ref, ok_ref):
    # Table blocks: [TS, D] -> broadcast over batch (size-1 dim) and heads on the VPU.
    cos = cos_ref[...][None, :, None, :]          # (1, TS, 1, D)
    sin_f = sin_fwd_ref[...][None, :, None, :]    # (1, TS, 1, D)
    sin_b = sin_bwd_ref[...][None, :, None, :]    # (1, TS, 1, D)
    d = xq_ref.shape[-1]

    def rotate(x_ref, o_ref):
        x = x_ref[...].astype(cos.dtype)
        # Non-negative shifts only (pltpu.roll requirement); D-1 == -1 mod D.
        x_next = pltpu.roll(x, d - 1, axis=3)     # x[..., (j+1) % D]  (XLU)
        x_prev = pltpu.roll(x, 1, axis=3)         # x[..., (j-1) % D]  (XLU)
        o_ref[...] = (x * cos + x_next * sin_f + x_prev * sin_b).astype(o_ref.dtype)

    rotate(xq_ref, oq_ref)
    rotate(xk_ref, ok_ref)


# ---------------------------------------------------------------------------
# Generation-aware budgets (VMEM limit + per-block target size).
# ---------------------------------------------------------------------------
def _tpu_budgets():
    kind = ""
    try:
        dev = jax.devices()[0]
        if dev.platform == "tpu":
            kind = dev.device_kind.lower()
    except Exception:
        pass
    is_v5e = ("v5 lite" in kind) or ("v5e" in kind) or ("v5litepod" in kind)
    is_v7 = ("v7" in kind) or ("tpu7" in kind)
    if kind and not is_v7:
        # v5e / v6e (and other 128-MiB-VMEM chips): big blocks, big scoped limit.
        vmem_limit = 96 * 1024 * 1024
        target_block_bytes = 4 << 20
    else:
        # v7x (64 MiB physical VMEM) or unknown backend: stay conservative.
        vmem_limit = 48 * 1024 * 1024
        target_block_bytes = 2 << 20
    return vmem_limit, target_block_bytes, is_v5e


# ---------------------------------------------------------------------------
# Wrapper equivalent to RotaryEmbeddingLayer.forward(xq=..., xk=..., start_index=...)
# ---------------------------------------------------------------------------
def rope_forward(xq, xk, cos_table, sin_fwd_table, sin_bwd_table, start_index,
                 *, target_block_bytes=None, vmem_limit_bytes=None):
    B, S, H, D = xq.shape
    assert xk.shape == (B, S, H, D)
    assert D % 2 == 0
    assert cos_table.shape[-1] == D
    assert sin_fwd_table.shape == cos_table.shape and sin_bwd_table.shape == cos_table.shape
    if isinstance(start_index, int):  # only check when static (traced start_index also works)
        assert cos_table.shape[0] >= start_index + S, "Sequence length longer than embedding table"

    auto_vmem, auto_block, is_v5e = _tpu_budgets()
    if vmem_limit_bytes is None:
        vmem_limit_bytes = auto_vmem
    if target_block_bytes is None:
        target_block_bytes = auto_block

    # Compute dtype: bf16 on v6e/v7x when the activations are bf16, f32 otherwise.
    compute_dtype = jnp.float32
    if xq.dtype == jnp.bfloat16 and not is_v5e:
        compute_dtype = jnp.bfloat16

    # table[start_index : start_index + S] (done once, cast to the compute dtype).
    cos = jax.lax.dynamic_slice_in_dim(cos_table, start_index, S, axis=0).astype(compute_dtype)
    sin_f = jax.lax.dynamic_slice_in_dim(sin_fwd_table, start_index, S, axis=0).astype(compute_dtype)
    sin_b = jax.lax.dynamic_slice_in_dim(sin_bwd_table, start_index, S, axis=0).astype(compute_dtype)

    # Sequence tile: biggest block that fits the budget (in the *input* dtype),
    # capped so the grid keeps >= ceil(4/B) sequence tiles (v7x megacore + pipeline).
    itemsize = jnp.dtype(xq.dtype).itemsize
    bytes_per_seq_row = H * D * itemsize
    ts = max(8, target_block_bytes // bytes_per_seq_row)
    min_s_tiles = -(-4 // B)
    if min_s_tiles > 1 and S >= 8 * min_s_tiles:
        ts = min(ts, max(8, S // min_s_tiles))
    if ts >= S:
        ts = S
    else:
        ts = max(8, (ts // 8) * 8)      # keep the (TS, D) table block sublane-tileable
        if ts >= S:
            ts = S

    num_s_tiles = pl.cdiv(S, ts)
    # Grid order (seq_tiles, batch): table block index is constant across the inner
    # batch loop, so Pallas skips re-DMAing the [TS, D] table slices for every b.
    grid = (num_s_tiles, B)

    x_spec = pl.BlockSpec((1, ts, H, D), lambda s, b: (b, s, 0, 0))
    tbl_spec = pl.BlockSpec((ts, D), lambda s, b: (s, 0))
    out_sds = jax.ShapeDtypeStruct((B, S, H, D), xq.dtype)

    n_elems = 2 * B * S * H * D
    cost = pl.CostEstimate(
        flops=6 * n_elems,          # 3 muls + 2 adds (+cast) per output element
        transcendentals=0,
        bytes_accessed=2 * n_elems * itemsize
        + 3 * S * D * jnp.dtype(compute_dtype).itemsize,
    )

    oq, ok = pl.pallas_call(
        _rope_kernel,
        out_shape=[out_sds, out_sds],
        grid=grid,
        in_specs=[tbl_spec, tbl_spec, tbl_spec, x_spec, x_spec],
        out_specs=[x_spec, x_spec],
        compiler_params=pltpu.CompilerParams(
            dimension_semantics=("parallel", "parallel"),
            vmem_limit_bytes=vmem_limit_bytes,
        ),
        cost_estimate=cost,
    )(cos, sin_f, sin_b, xq, xk)
    return oq, ok


# ---------------------------------------------------------------------------
# Pure-JAX reference (mirrors the torch complex-math forward), built independently
# from the raw (non-interleaved) cos/sin for verification.
# ---------------------------------------------------------------------------
def rope_reference(xq, xk, start_index, max_seqlen, theta_value=10000.0):
    B, S, H, D = xq.shape
    half = D // 2
    freqs = 1.0 / theta_value ** (jnp.arange(0, D, 2)[:half].astype(jnp.float32) / D)
    t = jnp.arange(max_seqlen, dtype=jnp.float32)
    angles = jnp.outer(t, freqs)[start_index:start_index + S]     # [S, D//2]
    cos = jnp.cos(angles)[None, :, None, :]
    sin = jnp.sin(angles)[None, :, None, :]

    def apply(x):
        xr = x.reshape(B, S, H, half, 2)
        e, o = xr[..., 0], xr[..., 1]
        oe = e * cos - o * sin
        oo = e * sin + o * cos
        return jnp.stack([oe, oo], axis=-1).reshape(B, S, H, D).astype(x.dtype)

    return apply(xq), apply(xk)


if __name__ == "__main__":
    # Small shapes consistent with the module's forward: [bs, sl, heads, rope_dim]
    B, S, H, D = 2, 8, 4, 32
    MAX_SEQLEN = 16
    START_INDEX = 3

    key = jax.random.PRNGKey(0)
    kq, kk = jax.random.split(key)
    xq = jax.random.normal(kq, (B, S, H, D), dtype=jnp.float32)
    xk = jax.random.normal(kk, (B, S, H, D), dtype=jnp.float32)

    cos_table, sin_fwd_table, sin_bwd_table = create_rotary_embed_table(MAX_SEQLEN, D)

    xq_out, xk_out = rope_forward(xq, xk, cos_table, sin_fwd_table, sin_bwd_table, START_INDEX)
    jax.block_until_ready((xq_out, xk_out))

    xq_ref, xk_ref = rope_reference(xq, xk, START_INDEX, MAX_SEQLEN)
    assert xq_out.shape == xq.shape and xk_out.shape == xk.shape
    assert xq_out.dtype == xq.dtype and xk_out.dtype == xk.dtype
    assert jnp.allclose(xq_out, xq_ref, atol=1e-5, rtol=1e-5)
    assert jnp.allclose(xk_out, xk_ref, atol=1e-5, rtol=1e-5)

    print("KERNEL_OK")
</pallas_src>

<mosaic_0001>
module attributes {stable_mosaic.version = 11 : i64} {
  func.func @_rope_kernel(%arg0: i32, %arg1: i32, %arg2: memref<8x32xf32, #tpu.memory_space<vmem>>, %arg3: memref<8x32xf32, #tpu.memory_space<vmem>>, %arg4: memref<8x32xf32, #tpu.memory_space<vmem>>, %arg5: memref<1x8x4x32xf32, #tpu.memory_space<vmem>>, %arg6: memref<1x8x4x32xf32, #tpu.memory_space<vmem>>, %arg7: memref<1x8x4x32xf32, #tpu.memory_space<vmem>>, %arg8: memref<1x8x4x32xf32, #tpu.memory_space<vmem>>) attributes {dimension_semantics = [#tpu.dimension_semantics<parallel>, #tpu.dimension_semantics<parallel>], iteration_bounds = array<i64: 1, 2>, scalar_prefetch = 0 : i64, scratch_operands = 0 : i64, tpu.core_type = #tpu.core_type<tc>, window_params = [{transform_indices = @transform_0, window_bounds = array<i64: 8, 32>}, {transform_indices = @transform_1, window_bounds = array<i64: 8, 32>}, {transform_indices = @transform_2, window_bounds = array<i64: 8, 32>}, {transform_indices = @transform_3, window_bounds = array<i64: 1, 8, 4, 32>}, {transform_indices = @transform_4, window_bounds = array<i64: 1, 8, 4, 32>}, {transform_indices = @transform_5, window_bounds = array<i64: 1, 8, 4, 32>}, {transform_indices = @transform_6, window_bounds = array<i64: 1, 8, 4, 32>}]} {
    %c0 = arith.constant 0 : index
    %c0_0 = arith.constant 0 : index
    %0 = vector.load %arg2[%c0, %c0_0] : memref<8x32xf32, #tpu.memory_space<vmem>>, vector<8x32xf32>
    %1 = vector.shape_cast %0 : vector<8x32xf32> to vector<1x8x1x32xf32>
    %c0_1 = arith.constant 0 : index
    %c0_2 = arith.constant 0 : index
    %2 = vector.load %arg3[%c0_1, %c0_2] : memref<8x32xf32, #tpu.memory_space<vmem>>, vector<8x32xf32>
    %3 = vector.shape_cast %2 : vector<8x32xf32> to vector<1x8x1x32xf32>
    %c0_3 = arith.constant 0 : index
    %c0_4 = arith.constant 0 : index
    %4 = vector.load %arg4[%c0_3, %c0_4] : memref<8x32xf32, #tpu.memory_space<vmem>>, vector<8x32xf32>
    %5 = vector.shape_cast %4 : vector<8x32xf32> to vector<1x8x1x32xf32>
    %c0_5 = arith.constant 0 : index
    %c0_6 = arith.constant 0 : index
    %c0_7 = arith.constant 0 : index
    %c0_8 = arith.constant 0 : index
    %6 = vector.load %arg5[%c0_5, %c0_6, %c0_7, %c0_8] : memref<1x8x4x32xf32, #tpu.memory_space<vmem>>, vector<1x8x4x32xf32>
    %c31_i32 = arith.constant 31 : i32
    %7 = tpu.dynamic_rotate %6 by %c31_i32 dim 3 : vector<1x8x4x32xf32>, i32 -> vector<1x8x4x32xf32>
    %c1_i32 = arith.constant 1 : i32
    %8 = tpu.dynamic_rotate %6 by %c1_i32 dim 3 : vector<1x8x4x32xf32>, i32 -> vector<1x8x4x32xf32>
    %9 = vector.broadcast %1 : vector<1x8x1x32xf32> to vector<1x8x4x32xf32>
    %10 = arith.mulf %6, %9 : vector<1x8x4x32xf32>
    %11 = vector.broadcast %3 : vector<1x8x1x32xf32> to vector<1x8x4x32xf32>
    %12 = arith.mulf %7, %11 : vector<1x8x4x32xf32>
    %13 = arith.addf %10, %12 : vector<1x8x4x32xf32>
    %14 = vector.broadcast %5 : vector<1x8x1x32xf32> to vector<1x8x4x32xf32>
    %15 = arith.mulf %8, %14 : vector<1x8x4x32xf32>
    %16 = arith.addf %13, %15 : vector<1x8x4x32xf32>
    %c0_9 = arith.constant 0 : index
    %c0_10 = arith.constant 0 : index
    %c0_11 = arith.constant 0 : index
    %c0_12 = arith.constant 0 : index
    %17 = vector.load %arg7[%c0_9, %c0_10, %c0_11, %c0_12] : memref<1x8x4x32xf32, #tpu.memory_space<vmem>>, vector<1x8x4x32xf32>
    tpu.vector_store %arg7[%c0_9, %c0_10, %c0_11, %c0_12], %16 {strides = array<i32>} : memref<1x8x4x32xf32, #tpu.memory_space<vmem>>, vector<1x8x4x32xf32>,
    %c0_13 = arith.constant 0 : index
    %c0_14 = arith.constant 0 : index
    %c0_15 = arith.constant 0 : index
    %c0_16 = arith.constant 0 : index
    %18 = vector.load %arg6[%c0_13, %c0_14, %c0_15, %c0_16] : memref<1x8x4x32xf32, #tpu.memory_space<vmem>>, vector<1x8x4x32xf32>
    %c31_i32_17 = arith.constant 31 : i32
    %19 = tpu.dynamic_rotate %18 by %c31_i32_17 dim 3 : vector<1x8x4x32xf32>, i32 -> vector<1x8x4x32xf32>
    %c1_i32_18 = arith.constant 1 : i32
    %20 = tpu.dynamic_rotate %18 by %c1_i32_18 dim 3 : vector<1x8x4x32xf32>, i32 -> vector<1x8x4x32xf32>
    %21 = vector.broadcast %1 : vector<1x8x1x32xf32> to vector<1x8x4x32xf32>
    %22 = arith.mulf %18, %21 : vector<1x8x4x32xf32>
    %23 = vector.broadcast %3 : vector<1x8x1x32xf32> to vector<1x8x4x32xf32>
    %24 = arith.mulf %19, %23 : vector<1x8x4x32xf32>
    %25 = arith.addf %22, %24 : vector<1x8x4x32xf32>
    %26 = vector.broadcast %5 : vector<1x8x1x32xf32> to vector<1x8x4x32xf32>
    %27 = arith.mulf %20, %26 : vector<1x8x4x32xf32>
    %28 = arith.addf %25, %27 : vector<1x8x4x32xf32>
    %c0_19 = arith.constant 0 : index
    %c0_20 = arith.constant 0 : index
    %c0_21 = arith.constant 0 : index
    %c0_22 = arith.constant 0 : index
    %29 = vector.load %arg8[%c0_19, %c0_20, %c0_21, %c0_22] : memref<1x8x4x32xf32, #tpu.memory_space<vmem>>, vector<1x8x4x32xf32>
    tpu.vector_store %arg8[%c0_19, %c0_20, %c0_21, %c0_22], %28 {strides = array<i32>} : memref<1x8x4x32xf32, #tpu.memory_space<vmem>>, vector<1x8x4x32xf32>,
    return
  }
  func.func @transform_0(%arg0: i32, %arg1: i32) -> (i32, i32) {
    %c0_i32 = arith.constant 0 : i32
    %c0_i32_0 = arith.constant 0 : i32
    return %arg0, %c0_i32 : i32, i32
  }
  func.func @transform_1(%arg0: i32, %arg1: i32) -> (i32, i32) {
    %c0_i32 = arith.constant 0 : i32
    %c0_i32_0 = arith.constant 0 : i32
    return %arg0, %c0_i32 : i32, i32
  }
  func.func @transform_2(%arg0: i32, %arg1: i32) -> (i32, i32) {
    %c0_i32 = arith.constant 0 : i32
    %c0_i32_0 = arith.constant 0 : i32
    return %arg0, %c0_i32 : i32, i32
  }
  func.func @transform_3(%arg0: i32, %arg1: i32) -> (i32, i32, i32, i32) {
    %c0_i32 = arith.constant 0 : i32
    %c0_i32_0 = arith.constant 0 : i32
    %c0_i32_1 = arith.constant 0 : i32
    return %arg1, %arg0, %c0_i32, %c0_i32_0 : i32, i32, i32, i32
  }
  func.func @transform_4(%arg0: i32, %arg1: i32) -> (i32, i32, i32, i32) {
    %c0_i32 = arith.constant 0 : i32
    %c0_i32_0 = arith.constant 0 : i32
    %c0_i32_1 = arith.constant 0 : i32
    return %arg1, %arg0, %c0_i32, %c0_i32_0 : i32, i32, i32, i32
  }
  func.func @transform_5(%arg0: i32, %arg1: i32) -> (i32, i32, i32, i32) {
    %c0_i32 = arith.constant 0 : i32
    %c0_i32_0 = arith.constant 0 : i32
    %c0_i32_1 = arith.constant 0 : i32
    return %arg1, %arg0, %c0_i32, %c0_i32_0 : i32, i32, i32, i32
  }
  func.func @transform_6(%arg0: i32, %arg1: i32) -> (i32, i32, i32, i32) {
    %c0_i32 = arith.constant 0 : i32
    %c0_i32_0 = arith.constant 0 : i32
    %c0_i32_1 = arith.constant 0 : i32
    return %arg1, %arg0, %c0_i32, %c0_i32_0 : i32, i32, i32, i32
  }
}

</mosaic_0001>

<llo_original>
// kernel: tpu_custom_call.1
$region0: #{tpu_custom_call.1}
  #allocation0 [shape = 'u32[]', space=smem, size = 0x4, offset = 0x4, fixed_abs, tag = 'smem constant byte address 0x4 - core index']
  #allocation1 [shape = 'u32[144,128]{1,0:T(1,128)}', space=vmem, size = 0x12000, scoped, tag = 'internal scratch']
  %s0 = inlined_call_operand.hbm [shape: f32[8,32], index: 0, kind: input, shape index: {}]
  %s1 = inlined_call_operand.hbm [shape: f32[8,32], index: 1, kind: input, shape index: {}]
  %s2 = inlined_call_operand.hbm [shape: f32[8,32], index: 2, kind: input, shape index: {}]
  %s3 = inlined_call_operand.hbm [shape: f32[2,8,4,32], index: 3, kind: input, shape index: {}]
  %s4 = inlined_call_operand.hbm [shape: f32[2,8,4,32], index: 4, kind: input, shape index: {}]
  %s5 = inlined_call_operand.hbm [shape: f32[2,8,4,32], index: 5, kind: output, shape index: {0}]
  %s6 = inlined_call_operand.hbm [shape: f32[2,8,4,32], index: 6, kind: output, shape index: {1}]
  %7 = xla_tuple %s5, %s6
  %s8 = sld [smem:[#allocation0]]
  $region81: #{tpu_custom_call.1} parent=0
    _
  %s10 = ssub.s32 1, %s8
  %s11 = scalar_select 0, %s10, %s8
  $region1: #{tpu_custom_call.1} parent=0
    #allocation2 [shape = 'u8[4096]{0}', space=vmem, size = 0x1000, scoped, tag = 'input window, operand 0, single buffered']
    #allocation3 [shape = 's32[2]{0}', space=sflag, size = 0x8, scoped, tag = 'scoped memory for tpu_custom_call.1']
    #allocation4 [shape = 's32[2]{0}', space=sflag, size = 0x8, scoped, tag = 'scoped memory for tpu_custom_call.1']
    #allocation5 [shape = 'u8[4096]{0}', space=vmem, size = 0x1000, scoped, tag = 'input window, operand 1, single buffered']
    #allocation6 [shape = 's32[1]{0}', space=sflag, size = 0x4, scoped, tag = 'scoped memory for tpu_custom_call.1']
    #allocation7 [shape = 'u8[4096]{0}', space=vmem, size = 0x1000, scoped, tag = 'input window, operand 2, single buffered']
    #allocation8 [shape = 'u8[32768]{0}', space=vmem, size = 0x8000, scoped, tag = 'input window, operand 3']
    #allocation9 [shape = 's32[2]{0}', space=sflag, size = 0x8, scoped, tag = 'scoped memory for tpu_custom_call.1']
    #allocation10 [shape = 'u8[32768]{0}', space=vmem, size = 0x8000, scoped, tag = 'input window, operand 4']
    #allocation11 [shape = 'u8[32768]{0}', space=vmem, size = 0x8000, scoped, tag = 'output window, operand 0']
    #allocation12 [shape = 'u8[32768]{0}', space=vmem, size = 0x8000, scoped, tag = 'output window, operand 1']
    #allocation13 [shape = 's32[2]{0}', space=sflag, size = 0x8, scoped, tag = 'scoped memory for tpu_custom_call.1']
    %12 = vsyncpa [#allocation3], 0
    %13 = vsyncpa [#allocation6], 0
    %14 = vsyncpa [#allocation9], 0
    %s15 = scalar_lea.sflag [#allocation9], 1
    %16 = vsyncpa %s15, 0
    %17 = vsyncpa [#allocation4], 0
    %s18 = scalar_lea.sflag [#allocation4], 1
    %19 = vsyncpa %s18, 0
    %20 = vsyncpa [#allocation13], 0
    %s21 = scalar_lea.sflag [#allocation13], 1
    %22 = vsyncpa %s21, 0
    loop: start=0, step=1, limit=4
    $region2: #{tpu_custom_call.1} parent=1 // loop_pre_header
      _
    $region3: #{tpu_custom_call.1} parent=1 // loop_header
      %s24 = sphi 0, %s28
      %p25 = scmp.ge.s32.totalorder %s24, 4
      %s31 = sphi 0, %s43
      %s32 = sphi 0, %s39
      %s33 = sphi 0, %s31
      %s34 = sphi 0, %s32
      %s35 = sphi 0, %s33
      %s36 = sphi 0, %s34
      %s46 = sphi 0, %s48
      %s49 = sphi 0, %s46
      %s50 = sphi 0, %s49
      %s66 = sphi 0, %s50
      %s72 = sphi 0, %s74
      %s75 = sphi 0, %s72
      %s76 = sphi 0, %s75
      %s92 = sphi 0, %s76
      %s98 = sphi 0, %s100
      %s101 = sphi 0, %s98
      %s102 = sphi 0, %s101
      %s118 = sphi 0, %s102
      %s126 = sphi 0, %s128
      %s129 = sphi 0, %s126
      %s130 = sphi 0, %s129
      %s146 = sphi 0, %s130
      %s154 = sphi 0, %s156
      %s157 = sphi 0, %s154
      %s158 = sphi 0, %s157
      %s174 = sphi 0, %s158
      %s182 = sphi 0, %s184
      %s185 = sphi 0, %s182
      %s186 = sphi 0, %s185
      %s202 = sphi 0, %s186
      %s210 = sphi 0, %s212
      %s213 = sphi 0, %s210
      %s214 = sphi 0, %s213
      %s230 = sphi 0, %s214
    $region4: #{tpu_custom_call.1} parent=1 // loop_header_branch
      %27 = sbr.rel (%p25) target = $region8
    $region5: #{tpu_custom_call.1} parent=1 // loop_body
      %s29 = ssub.s32 %s24, 1
      %s30 = ssub.s32 %s24, 2
      %s37 = sadd.s32 1, %s32
      %p38 = scmp.ge.s32.totalorder %s37, 2
      %s39 = scalar_select %p38, 0, %s37
      %s40 = sadd.s32 1, %s31
      %s41 = scalar_select %p38, %s40, %s31
      %p42 = scmp.ge.s32.totalorder %s41, 1
      %s43 = scalar_select %p42, 0, %s41
      %s44 = ssub.s32 %s31, %s43
      %p45 = scmp.eq.s32.totalorder %s44, 0
      %s47 = sadd.s32 %s46, 1
      %s48 = scalar_select %p45, %s46, %s47
      %p51 = pneg %p45
      %p52 = scmp.eq.s32.totalorder %s24, 1
      %p53 = por %p51, %p52
      %p54 = scmp.ne.s32.totalorder %s46, %s49
      %p55 = scmp.eq.s32.totalorder %s24, 0
      %p56 = por %p54, %p55
      %p57 = scmp.ne.s32.totalorder %s46, %s49
      %p58 = scmp.eq.s32.totalorder %s29, 1
      %p59 = por %p57, %p58
      %p60 = scmp.ne.s32.totalorder %s49, %s50
      %p61 = scmp.eq.s32.totalorder %s29, 0
      %p62 = por %p60, %p61
      %p63 = scmp.ne.s32.totalorder %s49, %s50
      %p64 = scmp.eq.s32.totalorder %s30, 1
      %p65 = por %p63, %p64
      %p67 = scmp.ne.s32.totalorder %s50, %s66
      %p68 = scmp.eq.s32.totalorder %s30, 0
      %p69 = por %p67, %p68
      %s70 = ssub.s32 %s31, %s43
      %p71 = scmp.eq.s32.totalorder %s70, 0
      %s73 = sadd.s32 %s72, 1
      %s74 = scalar_select %p71, %s72, %s73
      %p77 = pneg %p71
      %p78 = scmp.eq.s32.totalorder %s24, 1
      %p79 = por %p77, %p78
      %p80 = scmp.ne.s32.totalorder %s72, %s75
      %p81 = scmp.eq.s32.totalorder %s24, 0
      %p82 = por %p80, %p81
      %p83 = scmp.ne.s32.totalorder %s72, %s75
      %p84 = scmp.eq.s32.totalorder %s29, 1
      %p85 = por %p83, %p84
      %p86 = scmp.ne.s32.totalorder %s75, %s76
      %p87 = scmp.eq.s32.totalorder %s29, 0
      %p88 = por %p86, %p87
      %p89 = scmp.ne.s32.totalorder %s75, %s76
      %p90 = scmp.eq.s32.totalorder %s30, 1
      %p91 = por %p89, %p90
      %p93 = scmp.ne.s32.totalorder %s76, %s92
      %p94 = scmp.eq.s32.totalorder %s30, 0
      %p95 = por %p93, %p94
      %s96 = ssub.s32 %s31, %s43
      %p97 = scmp.eq.s32.totalorder %s96, 0
      %s99 = sadd.s32 %s98, 1
      %s100 = scalar_select %p97, %s98, %s99
      %p103 = pneg %p97
      %p104 = scmp.eq.s32.totalorder %s24, 1
      %p105 = por %p103, %p104
      %p106 = scmp.ne.s32.totalorder %s98, %s101
      %p107 = scmp.eq.s32.totalorder %s24, 0
      %p108 = por %p106, %p107
      %p109 = scmp.ne.s32.totalorder %s98, %s101
      %p110 = scmp.eq.s32.totalorder %s29, 1
      %p111 = por %p109, %p110
      %p112 = scmp.ne.s32.totalorder %s101, %s102
      %p113 = scmp.eq.s32.totalorder %s29, 0
      %p114 = por %p112, %p113
      %p115 = scmp.ne.s32.totalorder %s101, %s102
      %p116 = scmp.eq.s32.totalorder %s30, 1
      %p117 = por %p115, %p116
      %p119 = scmp.ne.s32.totalorder %s102, %s118
      %p120 = scmp.eq.s32.totalorder %s30, 0
      %p121 = por %p119, %p120
      %s122 = ssub.s32 %s32, %s39
      %s123 = ssub.s32 %s31, %s43
      %s124 = sor.u32 %s122, %s123
      %p125 = scmp.eq.s32.totalorder %s124, 0
      %s127 = sadd.s32 %s126, 1
      %s128 = scalar_select %p125, %s126, %s127
      %p131 = pneg %p125
      %p132 = scmp.eq.s32.totalorder %s24, 1
      %p133 = por %p131, %p132
      %p134 = scmp.ne.s32.totalorder %s126, %s129
      %p135 = scmp.eq.s32.totalorder %s24, 0
      %p136 = por %p134, %p135
      %p137 = scmp.ne.s32.totalorder %s126, %s129
      %p138 = scmp.eq.s32.totalorder %s29, 1
      %p139 = por %p137, %p138
      %p140 = scmp.ne.s32.totalorder %s129, %s130
      %p141 = scmp.eq.s32.totalorder %s29, 0
      %p142 = por %p140, %p141
      %p143 = scmp.ne.s32.totalorder %s129, %s130
      %p144 = scmp.eq.s32.totalorder %s30, 1
      %p145 = por %p143, %p144
      %p147 = scmp.ne.s32.totalorder %s130, %s146
      %p148 = scmp.eq.s32.totalorder %s30, 0
      %p149 = por %p147, %p148
      %s150 = ssub.s32 %s32, %s39
      %s151 = ssub.s32 %s31, %s43
      %s152 = sor.u32 %s150, %s151
      %p153 = scmp.eq.s32.totalorder %s152, 0
      %s155 = sadd.s32 %s154, 1
      %s156 = scalar_select %p153, %s154, %s155
      %p159 = pneg %p153
      %p160 = scmp.eq.s32.totalorder %s24, 1
      %p161 = por %p159, %p160
      %p162 = scmp.ne.s32.totalorder %s154, %s157
      %p163 = scmp.eq.s32.totalorder %s24, 0
      %p164 = por %p162, %p163
      %p165 = scmp.ne.s32.totalorder %s154, %s157
      %p166 = scmp.eq.s32.totalorder %s29, 1
      %p167 = por %p165, %p166
      %p168 = scmp.ne.s32.totalorder %s157, %s158
      %p169 = scmp.eq.s32.totalorder %s29, 0
      %p170 = por %p168, %p169
      %p171 = scmp.ne.s32.totalorder %s157, %s158
      %p172 = scmp.eq.s32.totalorder %s30, 1
      %p173 = por %p171, %p172
      %p175 = scmp.ne.s32.totalorder %s158, %s174
      %p176 = scmp.eq.s32.totalorder %s30, 0
      %p177 = por %p175, %p176
      %s178 = ssub.s32 %s32, %s39
      %s179 = ssub.s32 %s31, %s43
      %s180 = sor.u32 %s178, %s179
      %p181 = scmp.eq.s32.totalorder %s180, 0
      %s183 = sadd.s32 %s182, 1
      %s184 = scalar_select %p181, %s182, %s183
      %p187 = pneg %p181
      %p188 = scmp.eq.s32.totalorder %s24, 1
      %p189 = por %p187, %p188
      %p190 = scmp.ne.s32.totalorder %s182, %s185
      %p191 = scmp.eq.s32.totalorder %s24, 0
      %p192 = por %p190, %p191
      %p193 = scmp.ne.s32.totalorder %s182, %s185
      %p194 = scmp.eq.s32.totalorder %s29, 1
      %p195 = por %p193, %p194
      %p196 = scmp.ne.s32.totalorder %s185, %s186
      %p197 = scmp.eq.s32.totalorder %s29, 0
      %p198 = por %p196, %p197
      %p199 = scmp.ne.s32.totalorder %s185, %s186
      %p200 = scmp.eq.s32.totalorder %s30, 1
      %p201 = por %p199, %p200
      %p203 = scmp.ne.s32.totalorder %s186, %s202
      %p204 = scmp.eq.s32.totalorder %s30, 0
      %p205 = por %p203, %p204
      %s206 = ssub.s32 %s32, %s39
      %s207 = ssub.s32 %s31, %s43
      %s208 = sor.u32 %s206, %s207
      %p209 = scmp.eq.s32.totalorder %s208, 0
      %s211 = sadd.s32 %s210, 1
      %s212 = scalar_select %p209, %s210, %s211
      %p215 = pneg %p209
      %p216 = scmp.eq.s32.totalorder %s24, 1
      %p217 = por %p215, %p216
      %p218 = scmp.ne.s32.totalorder %s210, %s213
      %p219 = scmp.eq.s32.totalorder %s24, 0
      %p220 = por %p218, %p219
      %p221 = scmp.ne.s32.totalorder %s210, %s213
      %p222 = scmp.eq.s32.totalorder %s29, 1
      %p223 = por %p221, %p222
      %p224 = scmp.ne.s32.totalorder %s213, %s214
      %p225 = scmp.eq.s32.totalorder %s29, 0
      %p226 = por %p224, %p225
      %p227 = scmp.ne.s32.totalorder %s213, %s214
      %p228 = scmp.eq.s32.totalorder %s30, 1
      %p229 = por %p227, %p228
      %p231 = scmp.ne.s32.totalorder %s214, %s230
      %p232 = scmp.eq.s32.totalorder %s30, 0
      %p233 = por %p231, %p232
      %p234 = scmp.le.s32.totalorder 1, %s24
      %p235 = scmp.lt.s32.totalorder %s24, 3
      %p236 = pnand %p234, %p235
      %p237 = pneg %p236
      // Predicated region
      $region9: #{tpu_custom_call.1} parent=5 // pred_check
        _
      $region10: #{tpu_custom_call.1} parent=5 // pred_check_branch
        %239 = sbr.rel (%p236) target = $region12
      $region11: #{tpu_custom_call.1} parent=5 // pred_region
        %s240 = ssub.s32 %s24, 1
        // Predicated region
        $region13: #{tpu_custom_call.1} parent=11 // pred_check
          %p241 = pneg %p62
        $region14: #{tpu_custom_call.1} parent=11 // pred_check_branch
          %243 = sbr.rel (%p241) target = $region16
        $region15: #{tpu_custom_call.1} parent=11 // pred_region
          %s245 = ssub.s32 128, 128
          %246 = vsyncadd [#allocation3], %s245
          %s247 = smul.addr %s33, 128
          %s248 = scalar_lea.hbm %s0, %s247
          %s250 = sshll.u32 [#allocation2], 4
          %s251 = int_to_ptr.vmem [resolvable:$true] %s250
          %253 = dma.hbm_to_vmem [thread:$0]  %s248, 128, %s251, [#allocation3]
        $region16: #{tpu_custom_call.1} parent=11 // pred_fallthru
          _
        // Predicated region
        $region17: #{tpu_custom_call.1} parent=11 // pred_check
          %p254 = pneg %p88
        $region18: #{tpu_custom_call.1} parent=11 // pred_check_branch
          %256 = sbr.rel (%p254) target = $region20
        $region19: #{tpu_custom_call.1} parent=11 // pred_region
          %s258 = ssub.s32 128, 128
          %259 = vsyncadd [#allocation6], %s258
          %s260 = smul.addr %s33, 128
          %s261 = scalar_lea.hbm %s1, %s260
          %s263 = sshll.u32 [#allocation5], 4
          %s264 = int_to_ptr.vmem [resolvable:$true] %s263
          %266 = dma.hbm_to_vmem [thread:$0]  %s261, 128, %s264, [#allocation6]
        $region20: #{tpu_custom_call.1} parent=11 // pred_fallthru
          _
        // Predicated region
        $region21: #{tpu_custom_call.1} parent=11 // pred_check
          %p267 = pneg %p114
        $region22: #{tpu_custom_call.1} parent=11 // pred_check_branch
          %269 = sbr.rel (%p267) target = $region24
        $region23: #{tpu_custom_call.1} parent=11 // pred_region
          %s271 = ssub.s32 128, 128
          %272 = vsyncadd [#allocation6], %s271
          %s273 = smul.addr %s33, 128
          %s274 = scalar_lea.hbm %s2, %s273
          %s276 = sshll.u32 [#allocation7], 4
          %s277 = int_to_ptr.vmem [resolvable:$true] %s276
          %279 = dma.hbm_to_vmem [thread:$0]  %s274, 128, %s277, [#allocation6]
        $region24: #{tpu_custom_call.1} parent=11 // pred_fallthru
          _
      $region12: #{tpu_custom_call.1} parent=5 // pred_fallthru
        _
      %p280 = scmp.lt.s32.totalorder %s24, 2
      // Predicated region
      $region25: #{tpu_custom_call.1} parent=5 // pred_check
        %p281 = pneg %p280
      $region26: #{tpu_custom_call.1} parent=5 // pred_check_branch
        %283 = sbr.rel (%p281) target = $region28
      $region27: #{tpu_custom_call.1} parent=5 // pred_region
        // Predicated region
        $region29: #{tpu_custom_call.1} parent=27 // pred_check
          %p284 = pneg %p136
        $region30: #{tpu_custom_call.1} parent=27 // pred_check_branch
          %286 = sbr.rel (%p284) target = $region32
        $region31: #{tpu_custom_call.1} parent=27 // pred_region
          %s287 = sand.u32 %s24, 1
          %s288 = scalar_lea.sflag [#allocation9], %s287
          %s289 = sand.u32 %s126, 1
          %s290 = smul.addr %s289, 32
          %s291 = scalar_lea.vmem [#allocation8], %s290
          %s292 = smul.u32 8, %s31
          %s294 = ssub.s32 512, 512
          %295 = vsyncadd %s288, %s294
          %s296 = smul.addr %s32, 8
          %s297 = sadd.s32 %s292, %s296
          %s298 = smul.addr %s297, 64
          %s299 = scalar_lea.hbm %s3, %s298
          %s300 = sshll.u32 %s291, 4
          %s301 = int_to_ptr.vmem [resolvable:$true] %s300
          %306 = dma.hbm_to_vmem [thread:$0]  %s299, 512, %s301, %s288, 64, 64, 4
        $region32: #{tpu_custom_call.1} parent=27 // pred_fallthru
          _
        // Predicated region
        $region33: #{tpu_custom_call.1} parent=27 // pred_check
          %p307 = pneg %p164
        $region34: #{tpu_custom_call.1} parent=27 // pred_check_branch
          %309 = sbr.rel (%p307) target = $region36
        $region35: #{tpu_custom_call.1} parent=27 // pred_region
          %s310 = sand.u32 %s24, 1
          %s311 = scalar_lea.sflag [#allocation9], %s310
          %s312 = sand.u32 %s154, 1
          %s313 = smul.addr %s312, 32
          %s314 = scalar_lea.vmem [#allocation10], %s313
          %s315 = smul.u32 8, %s31
          %s317 = ssub.s32 512, 512
          %318 = vsyncadd %s311, %s317
          %s319 = smul.addr %s32, 8
          %s320 = sadd.s32 %s315, %s319
          %s321 = smul.addr %s320, 64
          %s322 = scalar_lea.hbm %s4, %s321
          %s323 = sshll.u32 %s314, 4
          %s324 = int_to_ptr.vmem [resolvable:$true] %s323
          %329 = dma.hbm_to_vmem [thread:$0]  %s322, 512, %s324, %s311, 64, 64, 4
        $region36: #{tpu_custom_call.1} parent=27 // pred_fallthru
          _
      $region28: #{tpu_custom_call.1} parent=5 // pred_fallthru
        _
      %p330 = scmp.le.s32.totalorder 1, %s24
      %p331 = scmp.lt.s32.totalorder %s24, 3
      %p332 = pnand %p330, %p331
      %p333 = pneg %p332
      // Predicated region
      $region37: #{tpu_custom_call.1} parent=5 // pred_check
        _
      $region38: #{tpu_custom_call.1} parent=5 // pred_check_branch
        %335 = sbr.rel (%p332) target = $region40
      $region39: #{tpu_custom_call.1} parent=5 // pred_region
        %s336 = ssub.s32 %s24, 1
        // Predicated region
        $region41: #{tpu_custom_call.1} parent=39 // pred_check
          %p337 = pneg %p62
        $region42: #{tpu_custom_call.1} parent=39 // pred_check_branch
          %339 = sbr.rel (%p337) target = $region44
        $region43: #{tpu_custom_call.1} parent=39 // pred_region
          %340 = dma.done [#allocation3], 128
        $region44: #{tpu_custom_call.1} parent=39 // pred_fallthru
          _
        // Predicated region
        $region45: #{tpu_custom_call.1} parent=39 // pred_check
          %p341 = pneg %p88
        $region46: #{tpu_custom_call.1} parent=39 // pred_check_branch
          %343 = sbr.rel (%p341) target = $region48
        $region47: #{tpu_custom_call.1} parent=39 // pred_region
          %344 = dma.done [#allocation6], 128
        $region48: #{tpu_custom_call.1} parent=39 // pred_fallthru
          _
        // Predicated region
        $region49: #{tpu_custom_call.1} parent=39 // pred_check
          %p345 = pneg %p114
        $region50: #{tpu_custom_call.1} parent=39 // pred_check_branch
          %347 = sbr.rel (%p345) target = $region52
        $region51: #{tpu_custom_call.1} parent=39 // pred_region
          %348 = dma.done [#allocation6], 128
        $region52: #{tpu_custom_call.1} parent=39 // pred_fallthru
          _
        %s349 = sand.u32 %s29, 1
        %s350 = scalar_lea.sflag [#allocation9], %s349
        %s351 = sand.u32 %s129, 1
        %s352 = smul.addr %s351, 32
        %s353 = scalar_lea.vmem [#allocation8], %s352
        // Predicated region
        $region53: #{tpu_custom_call.1} parent=39 // pred_check
          %p354 = pneg %p142
        $region54: #{tpu_custom_call.1} parent=39 // pred_check_branch
          %356 = sbr.rel (%p354) target = $region56
        $region55: #{tpu_custom_call.1} parent=39 // pred_region
          %357 = dma.done %s350, 512
        $region56: #{tpu_custom_call.1} parent=39 // pred_fallthru
          _
        %s358 = sand.u32 %s29, 1
        %s359 = scalar_lea.sflag [#allocation9], %s358
        %s360 = sand.u32 %s157, 1
        %s361 = smul.addr %s360, 32
        %s362 = scalar_lea.vmem [#allocation10], %s361
        // Predicated region
        $region57: #{tpu_custom_call.1} parent=39 // pred_check
          %p363 = pneg %p170
        $region58: #{tpu_custom_call.1} parent=39 // pred_check_branch
          %365 = sbr.rel (%p363) target = $region60
        $region59: #{tpu_custom_call.1} parent=39 // pred_region
          %366 = dma.done %s359, 512
        $region60: #{tpu_custom_call.1} parent=39 // pred_fallthru
          _
        %p367 = pneg %p62
        %p368 = pneg %p59
        %p369 = pneg %p88
        %p370 = pneg %p85
        %p371 = pneg %p114
        %p372 = pneg %p111
        %s373 = sand.u32 %s29, 1
        %s374 = scalar_lea.sflag [#allocation9], %s373
        %s375 = sand.u32 %s129, 1
        %s376 = smul.addr %s375, 32
        %s377 = scalar_lea.vmem [#allocation8], %s376
        %p378 = pneg %p142
        %p379 = pneg %p139
        %s380 = sand.u32 %s29, 1
        %s381 = scalar_lea.sflag [#allocation9], %s380
        %s382 = sand.u32 %s157, 1
        %s383 = smul.addr %s382, 32
        %s384 = scalar_lea.vmem [#allocation10], %s383
        %p385 = pneg %p170
        %p386 = pneg %p167
        %p387 = pneg %p198
        %p388 = pneg %p195
        %s389 = sand.u32 %s185, 1
        %s390 = scalar_lea.sflag [#allocation4], %s389
        %s391 = sand.u32 %s185, 1
        %s392 = smul.addr %s391, 32
        %s393 = scalar_lea.vmem [#allocation11], %s392
        %p394 = pneg %p226
        %p395 = pneg %p223
        %s396 = sand.u32 %s213, 1
        %s397 = scalar_lea.sflag [#allocation13], %s396
        %s398 = sand.u32 %s213, 1
        %s399 = smul.addr %s398, 32
        %s400 = scalar_lea.vmem [#allocation12], %s399
        %s401 = smul.u32 8, %s33
        %s402 = smul.u32 8, %s33
        %s403 = smul.u32 8, %s33
        %s404 = smul.u32 8, %s33
        %v405 = vld [vmem:[#allocation2] sm:$0xff]
        %v407 = vcombine.high %v405, %v405
        %v409 = vunpack.c.l.s4 1966171168
        %v410 = vunpack.c.0.s8 %v409
        %v411 = vlaneseq
        %v412 = vshrl.u32 %v411, 7
        %v413 = vsub.s32 %v410, %v412
        %v414 = vrot.slane %v405, %v413
        %v416 = vunpack.c.l.s4 1966171168
        %v417 = vunpack.c.0.s8 %v416
        %v418 = vlaneseq
        %v419 = vshrl.u32 %v418, 7
        %v420 = vsub.s32 %v417, %v419
        %v421 = vrot.slane %v407, %v420
        %v422 = vcombine.high %v414, %v414
        %v423 = vcombine.high %v421, %v421
        %v425 = vunpack.c.l.s4 1966171168
        %v426 = vunpack.c.0.s8 %v425
        %v427 = vlaneseq
        %v428 = vshrl.u32 %v427, 7
        %v429 = vsub.s32 %v426, %v428
        %v430 = vrot.slane %v414, %v429
        %v432 = vunpack.c.l.s4 1966171168
        %v433 = vunpack.c.0.s8 %v432
        %v434 = vlaneseq
        %v435 = vshrl.u32 %v434, 7
        %v436 = vsub.s32 %v433, %v435
        %v437 = vrot.slane %v421, %v436
        %v439 = vunpack.c.l.s4 1966171168
        %v440 = vunpack.c.0.s8 %v439
        %v441 = vlaneseq
        %v442 = vshrl.u32 %v441, 7
        %v443 = vsub.s32 %v440, %v442
        %v444 = vrot.slane %v422, %v443
        %v446 = vunpack.c.l.s4 1966171168
        %v447 = vunpack.c.0.s8 %v446
        %v448 = vlaneseq
        %v449 = vshrl.u32 %v448, 7
        %v450 = vsub.s32 %v447, %v449
        %v451 = vrot.slane %v423, %v450
        %v452 = vcombine.high %v430, %v430
        %v453 = vcombine.high %v437, %v437
        %v454 = vcombine.high %v444, %v444
        %v455 = vcombine.high %v451, %v451
        %v456 = vld [vmem:[#allocation5] sm:$0xff]
        %v458 = vcombine.high %v456, %v456
        %v460 = vunpack.c.l.s4 1966171168
        %v461 = vunpack.c.0.s8 %v460
        %v462 = vlaneseq
        %v463 = vshrl.u32 %v462, 7
        %v464 = vsub.s32 %v461, %v463
        %v465 = vrot.slane %v456, %v464
        %v467 = vunpack.c.l.s4 1966171168
        %v468 = vunpack.c.0.s8 %v467
        %v469 = vlaneseq
        %v470 = vshrl.u32 %v469, 7
        %v471 = vsub.s32 %v468, %v470
        %v472 = vrot.slane %v458, %v471
        %v473 = vcombine.high %v465, %v465
        %v474 = vcombine.high %v472, %v472
        %v476 = vunpack.c.l.s4 1966171168
        %v477 = vunpack.c.0.s8 %v476
        %v478 = vlaneseq
        %v479 = vshrl.u32 %v478, 7
        %v480 = vsub.s32 %v477, %v479
        %v481 = vrot.slane %v465, %v480
        %v483 = vunpack.c.l.s4 1966171168
        %v484 = vunpack.c.0.s8 %v483
        %v485 = vlaneseq
        %v486 = vshrl.u32 %v485, 7
        %v487 = vsub.s32 %v484, %v486
        %v488 = vrot.slane %v472, %v487
        %v490 = vunpack.c.l.s4 1966171168
        %v491 = vunpack.c.0.s8 %v490
        %v492 = vlaneseq
        %v493 = vshrl.u32 %v492, 7
        %v494 = vsub.s32 %v491, %v493
        %v495 = vrot.slane %v473, %v494
        %v497 = vunpack.c.l.s4 1966171168
        %v498 = vunpack.c.0.s8 %v497
        %v499 = vlaneseq
        %v500 = vshrl.u32 %v499, 7
        %v501 = vsub.s32 %v498, %v500
        %v502 = vrot.slane %v474, %v501
        %v503 = vcombine.high %v481, %v481
        %v504 = vcombine.high %v488, %v488
        %v505 = vcombine.high %v495, %v495
        %v506 = vcombine.high %v502, %v502
        %v507 = vld [vmem:[#allocation7] sm:$0xff]
        %v509 = vcombine.high %v507, %v507
        %v511 = vunpack.c.l.s4 1966171168
        %v512 = vunpack.c.0.s8 %v511
        %v513 = vlaneseq
        %v514 = vshrl.u32 %v513, 7
        %v515 = vsub.s32 %v512, %v514
        %v516 = vrot.slane %v507, %v515
        %v518 = vunpack.c.l.s4 1966171168
        %v519 = vunpack.c.0.s8 %v518
        %v520 = vlaneseq
        %v521 = vshrl.u32 %v520, 7
        %v522 = vsub.s32 %v519, %v521
        %v523 = vrot.slane %v509, %v522
        %v524 = vcombine.high %v516, %v516
        %v525 = vcombine.high %v523, %v523
        %v527 = vunpack.c.l.s4 1966171168
        %v528 = vunpack.c.0.s8 %v527
        %v529 = vlaneseq
        %v530 = vshrl.u32 %v529, 7
        %v531 = vsub.s32 %v528, %v530
        %v532 = vrot.slane %v516, %v531
        %v534 = vunpack.c.l.s4 1966171168
        %v535 = vunpack.c.0.s8 %v534
        %v536 = vlaneseq
        %v537 = vshrl.u32 %v536, 7
        %v538 = vsub.s32 %v535, %v537
        %v539 = vrot.slane %v523, %v538
        %v541 = vunpack.c.l.s4 1966171168
        %v542 = vunpack.c.0.s8 %v541
        %v543 = vlaneseq
        %v544 = vshrl.u32 %v543, 7
        %v545 = vsub.s32 %v542, %v544
        %v546 = vrot.slane %v524, %v545
        %v548 = vunpack.c.l.s4 1966171168
        %v549 = vunpack.c.0.s8 %v548
        %v550 = vlaneseq
        %v551 = vshrl.u32 %v550, 7
        %v552 = vsub.s32 %v549, %v551
        %v553 = vrot.slane %v525, %v552
        %v554 = vcombine.high %v532, %v532
        %v555 = vcombine.high %v539, %v539
        %v556 = vcombine.high %v546, %v546
        %v557 = vcombine.high %v553, %v553
        %v558 = vld [vmem:[%s353] sm:$0xf]
        %v559 = vld [vmem:[%s353 + $0x4] sm:$0xf]
        %v560 = vld [vmem:[%s353 + $0x8] sm:$0xf]
        %v561 = vld [vmem:[%s353 + $0xc] sm:$0xf]
        %v562 = vld [vmem:[%s353 + $0x10] sm:$0xf]
        %v563 = vld [vmem:[%s353 + $0x14] sm:$0xf]
        %v564 = vld [vmem:[%s353 + $0x18] sm:$0xf]
        %v565 = vld [vmem:[%s353 + $0x1c] sm:$0xf]
        %vm566 = vcmask 1047808
        %567 = vrot.lane.b32.xlu0 %v558, 32
        %v568 = vpop.permute.xlu0 %567
        %v569 = vsel %vm566, %v568, %v558
        %570 = vrot.lane.b32.xlu0 %v559, 32
        %v571 = vpop.permute.xlu0 %570
        %v572 = vsel %vm566, %v571, %v559
        %573 = vrot.lane.b32.xlu0 %v560, 32
        %v574 = vpop.permute.xlu0 %573
        %v575 = vsel %vm566, %v574, %v560
        %576 = vrot.lane.b32.xlu0 %v561, 32
        %v577 = vpop.permute.xlu0 %576
        %v578 = vsel %vm566, %v577, %v561
        %579 = vrot.lane.b32.xlu0 %v562, 32
        %v580 = vpop.permute.xlu0 %579
        %v581 = vsel %vm566, %v580, %v562
        %582 = vrot.lane.b32.xlu0 %v563, 32
        %v583 = vpop.permute.xlu0 %582
        %v584 = vsel %vm566, %v583, %v563
        %585 = vrot.lane.b32.xlu0 %v564, 32
        %v586 = vpop.permute.xlu0 %585
        %v587 = vsel %vm566, %v586, %v564
        %588 = vrot.lane.b32.xlu0 %v565, 32
        %v589 = vpop.permute.xlu0 %588
        %v590 = vsel %vm566, %v589, %v565
        %591 = vrot.lane.b32.xlu0 %v569, 32
        %v592 = vpop.permute.xlu0 %591
        %593 = vrot.lane.b32.xlu0 %v572, 32
        %v594 = vpop.permute.xlu0 %593
        %595 = vrot.lane.b32.xlu0 %v575, 32
        %v596 = vpop.permute.xlu0 %595
        %597 = vrot.lane.b32.xlu0 %v578, 32
        %v598 = vpop.permute.xlu0 %597
        %599 = vrot.lane.b32.xlu0 %v581, 32
        %v600 = vpop.permute.xlu0 %599
        %601 = vrot.lane.b32.xlu0 %v584, 32
        %v602 = vpop.permute.xlu0 %601
        %603 = vrot.lane.b32.xlu0 %v587, 32
        %v604 = vpop.permute.xlu0 %603
        %605 = vrot.lane.b32.xlu0 %v590, 32
        %v606 = vpop.permute.xlu0 %605
        %v607 = vsel %vm566, %v592, %v558
        %v608 = vsel %vm566, %v594, %v559
        %v609 = vsel %vm566, %v596, %v560
        %v610 = vsel %vm566, %v598, %v561
        %v611 = vsel %vm566, %v600, %v562
        %v612 = vsel %vm566, %v602, %v563
        %v613 = vsel %vm566, %v604, %v564
        %v614 = vsel %vm566, %v606, %v565
        %v615 = vlaneseq
        %v616 = vshrl.u32 %v615, 7
        %v617 = vsub.s32 0, %v616
        %v618 = vrot.slane %v430, %v617
        %v619 = vlaneseq
        %v620 = vshrl.u32 %v619, 7
        %v621 = vsub.s32 0, %v620
        %v622 = vrot.slane %v444, %v621
        %v623 = vlaneseq
        %v624 = vshrl.u32 %v623, 7
        %v625 = vsub.s32 0, %v624
        %v626 = vrot.slane %v452, %v625
        %v627 = vlaneseq
        %v628 = vshrl.u32 %v627, 7
        %v629 = vsub.s32 0, %v628
        %v630 = vrot.slane %v454, %v629
        %v631 = vlaneseq
        %v632 = vshrl.u32 %v631, 7
        %v633 = vsub.s32 0, %v632
        %v634 = vrot.slane %v437, %v633
        %v635 = vlaneseq
        %v636 = vshrl.u32 %v635, 7
        %v637 = vsub.s32 0, %v636
        %v638 = vrot.slane %v451, %v637
        %v639 = vlaneseq
        %v640 = vshrl.u32 %v639, 7
        %v641 = vsub.s32 0, %v640
        %v642 = vrot.slane %v453, %v641
        %v643 = vlaneseq
        %v644 = vshrl.u32 %v643, 7
        %v645 = vsub.s32 0, %v644
        %v646 = vrot.slane %v455, %v645
        %v655 = vmul.f32 %v558, %v618
        %v656 = vmul.f32 %v559, %v622
        %v657 = vmul.f32 %v560, %v626
        %v658 = vmul.f32 %v561, %v630
        %v659 = vmul.f32 %v562, %v634
        %v660 = vmul.f32 %v563, %v638
        %v661 = vmul.f32 %v564, %v642
        %v662 = vmul.f32 %v565, %v646
        %v663 = vlaneseq
        %v664 = vshrl.u32 %v663, 7
        %v665 = vsub.s32 0, %v664
        %v666 = vrot.slane %v481, %v665
        %v667 = vlaneseq
        %v668 = vshrl.u32 %v667, 7
        %v669 = vsub.s32 0, %v668
        %v670 = vrot.slane %v495, %v669
        %v671 = vlaneseq
        %v672 = vshrl.u32 %v671, 7
        %v673 = vsub.s32 0, %v672
        %v674 = vrot.slane %v503, %v673
        %v675 = vlaneseq
        %v676 = vshrl.u32 %v675, 7
        %v677 = vsub.s32 0, %v676
        %v678 = vrot.slane %v505, %v677
        %v679 = vlaneseq
        %v680 = vshrl.u32 %v679, 7
        %v681 = vsub.s32 0, %v680
        %v682 = vrot.slane %v488, %v681
        %v683 = vlaneseq
        %v684 = vshrl.u32 %v683, 7
        %v685 = vsub.s32 0, %v684
        %v686 = vrot.slane %v502, %v685
        %v687 = vlaneseq
        %v688 = vshrl.u32 %v687, 7
        %v689 = vsub.s32 0, %v688
        %v690 = vrot.slane %v504, %v689
        %v691 = vlaneseq
        %v692 = vshrl.u32 %v691, 7
        %v693 = vsub.s32 0, %v692
        %v694 = vrot.slane %v506, %v693
        %695 = vrot.lane.b32.xlu0 %v666, 1
        %v696 = vpop.permute.xlu0 %695
        %697 = vrot.lane.b32.xlu0 %v670, 1
        %v698 = vpop.permute.xlu0 %697
        %699 = vrot.lane.b32.xlu0 %v674, 1
        %v700 = vpop.permute.xlu0 %699
        %701 = vrot.lane.b32.xlu0 %v678, 1
        %v702 = vpop.permute.xlu0 %701
        %703 = vrot.lane.b32.xlu0 %v682, 1
        %v704 = vpop.permute.xlu0 %703
        %705 = vrot.lane.b32.xlu0 %v686, 1
        %v706 = vpop.permute.xlu0 %705
        %707 = vrot.lane.b32.xlu0 %v690, 1
        %v708 = vpop.permute.xlu0 %707
        %709 = vrot.lane.b32.xlu0 %v694, 1
        %v710 = vpop.permute.xlu0 %709
        %v719 = vmul.f32 %v607, %v696
        %v720 = vmul.f32 %v608, %v698
        %v721 = vmul.f32 %v609, %v700
        %v722 = vmul.f32 %v610, %v702
        %v723 = vmul.f32 %v611, %v704
        %v724 = vmul.f32 %v612, %v706
        %v725 = vmul.f32 %v613, %v708
        %v726 = vmul.f32 %v614, %v710
        %735 = vrot.lane.b32.xlu0 %v719, 127
        %v736 = vpop.permute.xlu0 %735
        %737 = vrot.lane.b32.xlu0 %v720, 127
        %v738 = vpop.permute.xlu0 %737
        %739 = vrot.lane.b32.xlu0 %v721, 127
        %v740 = vpop.permute.xlu0 %739
        %741 = vrot.lane.b32.xlu0 %v722, 127
        %v742 = vpop.permute.xlu0 %741
        %743 = vrot.lane.b32.xlu0 %v723, 127
        %v744 = vpop.permute.xlu0 %743
        %745 = vrot.lane.b32.xlu0 %v724, 127
        %v746 = vpop.permute.xlu0 %745
        %747 = vrot.lane.b32.xlu0 %v725, 127
        %v748 = vpop.permute.xlu0 %747
        %749 = vrot.lane.b32.xlu0 %v726, 127
        %v750 = vpop.permute.xlu0 %749
        %v759 = vadd.f32 %v655, %v736
        %v760 = vadd.f32 %v656, %v738
        %v761 = vadd.f32 %v657, %v740
        %v762 = vadd.f32 %v658, %v742
        %v763 = vadd.f32 %v659, %v744
        %v764 = vadd.f32 %v660, %v746
        %v765 = vadd.f32 %v661, %v748
        %v766 = vadd.f32 %v662, %v750
        %v767 = vlaneseq
        %v768 = vshrl.u32 %v767, 7
        %v769 = vsub.s32 0, %v768
        %v770 = vrot.slane %v532, %v769
        %v771 = vlaneseq
        %v772 = vshrl.u32 %v771, 7
        %v773 = vsub.s32 0, %v772
        %v774 = vrot.slane %v546, %v773
        %v775 = vlaneseq
        %v776 = vshrl.u32 %v775, 7
        %v777 = vsub.s32 0, %v776
        %v778 = vrot.slane %v554, %v777
        %v779 = vlaneseq
        %v780 = vshrl.u32 %v779, 7
        %v781 = vsub.s32 0, %v780
        %v782 = vrot.slane %v556, %v781
        %v783 = vlaneseq
        %v784 = vshrl.u32 %v783, 7
        %v785 = vsub.s32 0, %v784
        %v786 = vrot.slane %v539, %v785
        %v787 = vlaneseq
        %v788 = vshrl.u32 %v787, 7
        %v789 = vsub.s32 0, %v788
        %v790 = vrot.slane %v553, %v789
        %v791 = vlaneseq
        %v792 = vshrl.u32 %v791, 7
        %v793 = vsub.s32 0, %v792
        %v794 = vrot.slane %v555, %v793
        %v795 = vlaneseq
        %v796 = vshrl.u32 %v795, 7
        %v797 = vsub.s32 0, %v796
        %v798 = vrot.slane %v557, %v797
        %799 = vrot.lane.b32.xlu0 %v770, 31
        %v800 = vpop.permute.xlu0 %799
        %801 = vrot.lane.b32.xlu0 %v774, 31
        %v802 = vpop.permute.xlu0 %801
        %803 = vrot.lane.b32.xlu0 %v778, 31
        %v804 = vpop.permute.xlu0 %803
        %805 = vrot.lane.b32.xlu0 %v782, 31
        %v806 = vpop.permute.xlu0 %805
        %807 = vrot.lane.b32.xlu0 %v786, 31
        %v808 = vpop.permute.xlu0 %807
        %809 = vrot.lane.b32.xlu0 %v790, 31
        %v810 = vpop.permute.xlu0 %809
        %811 = vrot.lane.b32.xlu0 %v794, 31
        %v812 = vpop.permute.xlu0 %811
        %813 = vrot.lane.b32.xlu0 %v798, 31
        %v814 = vpop.permute.xlu0 %813
        %v823 = vmul.f32 %v607, %v800
        %v824 = vmul.f32 %v608, %v802
        %v825 = vmul.f32 %v609, %v804
        %v826 = vmul.f32 %v610, %v806
        %v827 = vmul.f32 %v611, %v808
        %v828 = vmul.f32 %v612, %v810
        %v829 = vmul.f32 %v613, %v812
        %v830 = vmul.f32 %v614, %v814
        %839 = vrot.lane.b32.xlu0 %v823, 97
        %v840 = vpop.permute.xlu0 %839
        %841 = vrot.lane.b32.xlu0 %v824, 97
        %v842 = vpop.permute.xlu0 %841
        %843 = vrot.lane.b32.xlu0 %v825, 97
        %v844 = vpop.permute.xlu0 %843
        %845 = vrot.lane.b32.xlu0 %v826, 97
        %v846 = vpop.permute.xlu0 %845
        %847 = vrot.lane.b32.xlu0 %v827, 97
        %v848 = vpop.permute.xlu0 %847
        %849 = vrot.lane.b32.xlu0 %v828, 97
        %v850 = vpop.permute.xlu0 %849
        %851 = vrot.lane.b32.xlu0 %v829, 97
        %v852 = vpop.permute.xlu0 %851
        %853 = vrot.lane.b32.xlu0 %v830, 97
        %v854 = vpop.permute.xlu0 %853
        %v863 = vadd.f32 %v759, %v840
        %v864 = vadd.f32 %v760, %v842
        %v865 = vadd.f32 %v761, %v844
        %v866 = vadd.f32 %v762, %v846
        %v867 = vadd.f32 %v763, %v848
        %v868 = vadd.f32 %v764, %v850
        %v869 = vadd.f32 %v765, %v852
        %v870 = vadd.f32 %v766, %v854
        %vm871 = vcmask 257024
        %872 = vst.msk [vmem:[%s393] sm:$0xf] %vm871, %v863
        %873 = vst.msk [vmem:[%s393 + $0x4] sm:$0xf] %vm871, %v864
        %874 = vst.msk [vmem:[%s393 + $0x8] sm:$0xf] %vm871, %v865
        %875 = vst.msk [vmem:[%s393 + $0xc] sm:$0xf] %vm871, %v866
        %876 = vst.msk [vmem:[%s393 + $0x10] sm:$0xf] %vm871, %v867
        %877 = vst.msk [vmem:[%s393 + $0x14] sm:$0xf] %vm871, %v868
        %878 = vst.msk [vmem:[%s393 + $0x18] sm:$0xf] %vm871, %v869
        %879 = vst.msk [vmem:[%s393 + $0x1c] sm:$0xf] %vm871, %v870
        %v880 = vld [vmem:[%s362] sm:$0xf]
        %v881 = vld [vmem:[%s362 + $0x4] sm:$0xf]
        %v882 = vld [vmem:[%s362 + $0x8] sm:$0xf]
        %v883 = vld [vmem:[%s362 + $0xc] sm:$0xf]
        %v884 = vld [vmem:[%s362 + $0x10] sm:$0xf]
        %v885 = vld [vmem:[%s362 + $0x14] sm:$0xf]
        %v886 = vld [vmem:[%s362 + $0x18] sm:$0xf]
        %v887 = vld [vmem:[%s362 + $0x1c] sm:$0xf]
        %888 = vrot.lane.b32.xlu0 %v880, 32
        %v889 = vpop.permute.xlu0 %888
        %v890 = vsel %vm566, %v889, %v880
        %891 = vrot.lane.b32.xlu0 %v881, 32
        %v892 = vpop.permute.xlu0 %891
        %v893 = vsel %vm566, %v892, %v881
        %894 = vrot.lane.b32.xlu0 %v882, 32
        %v895 = vpop.permute.xlu0 %894
        %v896 = vsel %vm566, %v895, %v882
        %897 = vrot.lane.b32.xlu0 %v883, 32
        %v898 = vpop.permute.xlu0 %897
        %v899 = vsel %vm566, %v898, %v883
        %900 = vrot.lane.b32.xlu0 %v884, 32
        %v901 = vpop.permute.xlu0 %900
        %v902 = vsel %vm566, %v901, %v884
        %903 = vrot.lane.b32.xlu0 %v885, 32
        %v904 = vpop.permute.xlu0 %903
        %v905 = vsel %vm566, %v904, %v885
        %906 = vrot.lane.b32.xlu0 %v886, 32
        %v907 = vpop.permute.xlu0 %906
        %v908 = vsel %vm566, %v907, %v886
        %909 = vrot.lane.b32.xlu0 %v887, 32
        %v910 = vpop.permute.xlu0 %909
        %v911 = vsel %vm566, %v910, %v887
        %912 = vrot.lane.b32.xlu0 %v890, 32
        %v913 = vpop.permute.xlu0 %912
        %914 = vrot.lane.b32.xlu0 %v893, 32
        %v915 = vpop.permute.xlu0 %914
        %916 = vrot.lane.b32.xlu0 %v896, 32
        %v917 = vpop.permute.xlu0 %916
        %918 = vrot.lane.b32.xlu0 %v899, 32
        %v919 = vpop.permute.xlu0 %918
        %920 = vrot.lane.b32.xlu0 %v902, 32
        %v921 = vpop.permute.xlu0 %920
        %922 = vrot.lane.b32.xlu0 %v905, 32
        %v923 = vpop.permute.xlu0 %922
        %924 = vrot.lane.b32.xlu0 %v908, 32
        %v925 = vpop.permute.xlu0 %924
        %926 = vrot.lane.b32.xlu0 %v911, 32
        %v927 = vpop.permute.xlu0 %926
        %v928 = vsel %vm566, %v913, %v880
        %v929 = vsel %vm566, %v915, %v881
        %v930 = vsel %vm566, %v917, %v882
        %v931 = vsel %vm566, %v919, %v883
        %v932 = vsel %vm566, %v921, %v884
        %v933 = vsel %vm566, %v923, %v885
        %v934 = vsel %vm566, %v925, %v886
        %v935 = vsel %vm566, %v927, %v887
        %v936 = vmul.f32 %v880, %v618
        %v937 = vmul.f32 %v881, %v622
        %v938 = vmul.f32 %v882, %v626
        %v939 = vmul.f32 %v883, %v630
        %v940 = vmul.f32 %v884, %v634
        %v941 = vmul.f32 %v885, %v638
        %v942 = vmul.f32 %v886, %v642
        %v943 = vmul.f32 %v887, %v646
        %v944 = vmul.f32 %v928, %v696
        %v945 = vmul.f32 %v929, %v698
        %v946 = vmul.f32 %v930, %v700
        %v947 = vmul.f32 %v931, %v702
        %v948 = vmul.f32 %v932, %v704
        %v949 = vmul.f32 %v933, %v706
        %v950 = vmul.f32 %v934, %v708
        %v951 = vmul.f32 %v935, %v710
        %960 = vrot.lane.b32.xlu0 %v944, 127
        %v961 = vpop.permute.xlu0 %960
        %962 = vrot.lane.b32.xlu0 %v945, 127
        %v963 = vpop.permute.xlu0 %962
        %964 = vrot.lane.b32.xlu0 %v946, 127
        %v965 = vpop.permute.xlu0 %964
        %966 = vrot.lane.b32.xlu0 %v947, 127
        %v967 = vpop.permute.xlu0 %966
        %968 = vrot.lane.b32.xlu0 %v948, 127
        %v969 = vpop.permute.xlu0 %968
        %970 = vrot.lane.b32.xlu0 %v949, 127
        %v971 = vpop.permute.xlu0 %970
        %972 = vrot.lane.b32.xlu0 %v950, 127
        %v973 = vpop.permute.xlu0 %972
        %974 = vrot.lane.b32.xlu0 %v951, 127
        %v975 = vpop.permute.xlu0 %974
        %v984 = vadd.f32 %v936, %v961
        %v985 = vadd.f32 %v937, %v963
        %v986 = vadd.f32 %v938, %v965
        %v987 = vadd.f32 %v939, %v967
        %v988 = vadd.f32 %v940, %v969
        %v989 = vadd.f32 %v941, %v971
        %v990 = vadd.f32 %v942, %v973
        %v991 = vadd.f32 %v943, %v975
        %v992 = vmul.f32 %v928, %v800
        %v993 = vmul.f32 %v929, %v802
        %v994 = vmul.f32 %v930, %v804
        %v995 = vmul.f32 %v931, %v806
        %v996 = vmul.f32 %v932, %v808
        %v997 = vmul.f32 %v933, %v810
        %v998 = vmul.f32 %v934, %v812
        %v999 = vmul.f32 %v935, %v814
        %1008 = vrot.lane.b32.xlu0 %v992, 97
        %v1009 = vpop.permute.xlu0 %1008
        %1010 = vrot.lane.b32.xlu0 %v993, 97
        %v1011 = vpop.permute.xlu0 %1010
        %1012 = vrot.lane.b32.xlu0 %v994, 97
        %v1013 = vpop.permute.xlu0 %1012
        %1014 = vrot.lane.b32.xlu0 %v995, 97
        %v1015 = vpop.permute.xlu0 %1014
        %1016 = vrot.lane.b32.xlu0 %v996, 97
        %v1017 = vpop.permute.xlu0 %1016
        %1018 = vrot.lane.b32.xlu0 %v997, 97
        %v1019 = vpop.permute.xlu0 %1018
        %1020 = vrot.lane.b32.xlu0 %v998, 97
        %v1021 = vpop.permute.xlu0 %1020
        %1022 = vrot.lane.b32.xlu0 %v999, 97
        %v1023 = vpop.permute.xlu0 %1022
        %v1032 = vadd.f32 %v984, %v1009
        %v1033 = vadd.f32 %v985, %v1011
        %v1034 = vadd.f32 %v986, %v1013
        %v1035 = vadd.f32 %v987, %v1015
        %v1036 = vadd.f32 %v988, %v1017
        %v1037 = vadd.f32 %v989, %v1019
        %v1038 = vadd.f32 %v990, %v1021
        %v1039 = vadd.f32 %v991, %v1023
        %1040 = vst.msk [vmem:[%s400] sm:$0xf] %vm871, %v1032
        %1041 = vst.msk [vmem:[%s400 + $0x4] sm:$0xf] %vm871, %v1033
        %1042 = vst.msk [vmem:[%s400 + $0x8] sm:$0xf] %vm871, %v1034
        %1043 = vst.msk [vmem:[%s400 + $0xc] sm:$0xf] %vm871, %v1035
        %1044 = vst.msk [vmem:[%s400 + $0x10] sm:$0xf] %vm871, %v1036
        %1045 = vst.msk [vmem:[%s400 + $0x14] sm:$0xf] %vm871, %v1037
        %1046 = vst.msk [vmem:[%s400 + $0x18] sm:$0xf] %vm871, %v1038
        %1047 = vst.msk [vmem:[%s400 + $0x1c] sm:$0xf] %vm871, %v1039
        %s1048 = sand.u32 %s185, 1
        %s1049 = scalar_lea.sflag [#allocation4], %s1048
        %s1050 = sand.u32 %s185, 1
        %s1051 = smul.addr %s1050, 32
        %s1052 = scalar_lea.vmem [#allocation11], %s1051
        %s1053 = sand.u32 %s213, 1
        %s1054 = scalar_lea.sflag [#allocation13], %s1053
        %s1055 = sand.u32 %s213, 1
        %s1056 = smul.addr %s1055, 32
        %s1057 = scalar_lea.vmem [#allocation12], %s1056
        // Predicated region
        $region61: #{tpu_custom_call.1} parent=39 // pred_check
          %p1058 = pneg %p195
        $region62: #{tpu_custom_call.1} parent=39 // pred_check_branch
          %1060 = sbr.rel (%p1058) target = $region64
        $region63: #{tpu_custom_call.1} parent=39 // pred_region
          %s1061 = smul.u32 8, %s33
          %s1063 = ssub.s32 512, 512
          %1064 = vsyncadd %s1049, %s1063
          %s1065 = smul.addr %s34, 8
          %s1066 = sadd.s32 %s1061, %s1065
          %s1067 = smul.addr %s1066, 64
          %s1068 = scalar_lea.hbm %s5, %s1067
          %s1069 = sshll.u32 %s1052, 4
          %s1070 = int_to_ptr.vmem [resolvable:$true] %s1069
          %1075 = dma.vmem_to_hbm [thread:$0]  %s1070, 512, %s1068, %s1049, 64, 64, 4
        $region64: #{tpu_custom_call.1} parent=39 // pred_fallthru
          _
        // Predicated region
        $region65: #{tpu_custom_call.1} parent=39 // pred_check
          %p1076 = pneg %p223
        $region66: #{tpu_custom_call.1} parent=39 // pred_check_branch
          %1078 = sbr.rel (%p1076) target = $region68
        $region67: #{tpu_custom_call.1} parent=39 // pred_region
          %s1079 = smul.u32 8, %s33
          %s1081 = ssub.s32 512, 512
          %1082 = vsyncadd %s1054, %s1081
          %s1083 = smul.addr %s34, 8
          %s1084 = sadd.s32 %s1079, %s1083
          %s1085 = smul.addr %s1084, 64
          %s1086 = scalar_lea.hbm %s6, %s1085
          %s1087 = sshll.u32 %s1057, 4
          %s1088 = int_to_ptr.vmem [resolvable:$true] %s1087
          %1093 = dma.vmem_to_hbm [thread:$0]  %s1088, 512, %s1086, %s1054, 64, 64, 4
        $region68: #{tpu_custom_call.1} parent=39 // pred_fallthru
          _
      $region40: #{tpu_custom_call.1} parent=5 // pred_fallthru
        _
      %p1094 = scmp.le.s32.totalorder 2, %s24
      // Predicated region
      $region69: #{tpu_custom_call.1} parent=5 // pred_check
        %p1095 = pneg %p1094
      $region70: #{tpu_custom_call.1} parent=5 // pred_check_branch
        %1097 = sbr.rel (%p1095) target = $region72
      $region71: #{tpu_custom_call.1} parent=5 // pred_region
        %s1098 = ssub.s32 %s24, 2
        // Predicated region
        $region73: #{tpu_custom_call.1} parent=71 // pred_check
          %p1099 = pneg %p201
        $region74: #{tpu_custom_call.1} parent=71 // pred_check_branch
          %1101 = sbr.rel (%p1099) target = $region76
        $region75: #{tpu_custom_call.1} parent=71 // pred_region
          %s1102 = sand.u32 %s186, 1
          %s1103 = scalar_lea.sflag [#allocation4], %s1102
          %s1104 = sand.u32 %s186, 1
          %s1105 = smul.addr %s1104, 32
          %s1106 = scalar_lea.vmem [#allocation11], %s1105
          %1107 = dma.done %s1103, 512
        $region76: #{tpu_custom_call.1} parent=71 // pred_fallthru
          _
        // Predicated region
        $region77: #{tpu_custom_call.1} parent=71 // pred_check
          %p1108 = pneg %p229
        $region78: #{tpu_custom_call.1} parent=71 // pred_check_branch
          %1110 = sbr.rel (%p1108) target = $region80
        $region79: #{tpu_custom_call.1} parent=71 // pred_region
          %s1111 = sand.u32 %s214, 1
          %s1112 = scalar_lea.sflag [#allocation13], %s1111
          %s1113 = sand.u32 %s214, 1
          %s1114 = smul.addr %s1113, 32
          %s1115 = scalar_lea.vmem [#allocation12], %s1114
          %1116 = dma.done %s1112, 512
        $region80: #{tpu_custom_call.1} parent=71 // pred_fallthru
          _
      $region72: #{tpu_custom_call.1} parent=5 // pred_fallthru
        _
    $region6: #{tpu_custom_call.1} parent=1 // loop_footer
      %s28 = sadd.s32 1, %s24
    $region7: #{tpu_custom_call.1} parent=1 // loop_footer_branch
      %23 = sbr.rel target = $region3
    $region8: #{tpu_custom_call.1} parent=1 // loop_exit
      _
    %1117 = vsyncpa [#allocation3], 1
    %s1118 = scalar_lea.sflag [#allocation3], 1
    %1119 = vsyncpa %s1118, 1
    %1120 = vsyncpa [#allocation6], 1
    %1121 = vsyncpa [#allocation9], 1
    %s1122 = scalar_lea.sflag [#allocation9], 1
    %1123 = vsyncpa %s1122, 1
    %1124 = vsyncpa [#allocation4], 1
    %s1125 = scalar_lea.sflag [#allocation4], 1
    %1126 = vsyncpa %s1125, 1
    %1127 = vsyncpa [#allocation13], 1
    %s1128 = scalar_lea.sflag [#allocation13], 1
    %1129 = vsyncpa %s1128, 1

</llo_original>
